<compile_context>
chip_gen: v5e
topology: v5e:2x2
jax: 0.10.0
libtpu: 0.0.40
codegen_flags: <defaults>
</compile_context>

<pallas_src>
import math

import jax
import jax.numpy as jnp
import numpy as np
from jax.experimental import pallas as pl
from jax.experimental.pallas import tpu as pltpu


# ----------------------------------------------------------------------------
# Fused kernel: positional encoding + Linear(2*d_model -> d_model), lane-packed
# ----------------------------------------------------------------------------
def _pe_linear_kernel(x_ref, sd_ref, f_ref, ph_ref, wx_ref, wp_ref, b_ref, o_ref):
    x = x_ref[...]                                            # (rb, L)  f32, L = P*d_model
    sd = sd_ref[...]                                          # (rb, P)  f32

    # angle[r, p*d + j] = sd[r, p] * freq[j]   (freq folded into F host-side)
    angle = jnp.dot(sd, f_ref[...], preferred_element_type=jnp.float32)   # (rb, L)

    # pe = sin on even lanes, cos on odd lanes  ==  sin(angle + {0, pi/2})
    pe = jnp.sin(angle + ph_ref[...])

    # cat([x, pe], -1) @ W + b  ==  x @ W[:d] + pe @ W[d:] + b   (block-diag packed)
    acc = jnp.dot(x, wx_ref[...], preferred_element_type=jnp.float32)
    acc = acc + jnp.dot(pe, wp_ref[...], preferred_element_type=jnp.float32)
    o_ref[...] = acc + b_ref[...]


# ----------------------------------------------------------------------------
# Wrapper
# ----------------------------------------------------------------------------
def positional_encoding_sensor_dist(params, x, sensor_dist, *, row_block=4096):
    """x: (..., d_model); sensor_dist: broadcastable to x[..., 0] (flattened).

    Returns the flattened (N, d_model) output, exactly like the PyTorch module.
    Dropout is identity (inference).
    """
    d_model = params["w"].shape[1]
    assert d_model % 2 == 0, "d_model must be even (sin/cos pairing)"

    x2 = x.reshape(-1, d_model).astype(jnp.float32)            # (N, d_model)
    sd = sensor_dist.reshape(-1).astype(jnp.float32)           # (N,)
    n = x2.shape[0]

    # ---- lane packing factor: P logical rows per 128-lane row --------------
    if d_model <= 128 and 128 % d_model == 0:
        P = 128 // d_model
    else:
        P = 1
    lanes = P * d_model

    # Pad only to sublane alignment of the packed view (8 packed rows).
    align = 8 * P
    n_al = pl.cdiv(n, align) * align
    if n_al != n:
        x2 = jnp.pad(x2, ((0, n_al - n), (0, 0)))
        sd = jnp.pad(sd, (0, n_al - n))

    np_rows = n_al // P                                        # packed rows (mult of 8)
    x_p = x2.reshape(np_rows, lanes)                           # free row-major view
    sd_p = sd.reshape(np_rows, P)

    # ---- host-side constant tables (tiny) -----------------------------------
    w = params["w"].astype(jnp.float32)                        # (2*d_model, d_model) = torch W.T
    b = params["b"].astype(jnp.float32)                        # (1, d_model)
    wx, wp = w[:d_model], w[d_model:]

    j = np.arange(d_model)
    freq = np.exp(-(math.log(10000.0) / d_model) * (j - (j % 2))).astype(np.float32)
    phase = ((j % 2) * (math.pi / 2.0)).astype(np.float32)
    eye_p = np.eye(P, dtype=np.float32)

    F = jnp.asarray(np.kron(eye_p, freq[None, :]))             # (P, lanes): sd -> angle
    PH = jnp.asarray(np.tile(phase, P)[None, :])               # (1, lanes)
    Wx = jnp.kron(jnp.asarray(eye_p), wx)                      # (lanes, lanes) block-diag
    Wp = jnp.kron(jnp.asarray(eye_p), wp)                      # (lanes, lanes) block-diag
    Bt = jnp.tile(b, (1, P))                                   # (1, lanes)

    # ---- row tiling ----------------------------------------------------------
    rb = max(8, (min(max(row_block // P, 8), np_rows) // 8) * 8)
    grid = (pl.cdiv(np_rows, rb),)                             # ragged last block OK

    out_p = pl.pallas_call(
        _pe_linear_kernel,
        out_shape=jax.ShapeDtypeStruct((np_rows, lanes), jnp.float32),
        grid=grid,
        in_specs=[
            pl.BlockSpec((rb, lanes), lambda i: (i, 0)),       # packed x rows
            pl.BlockSpec((rb, P), lambda i: (i, 0)),           # packed sensor_dist
            pl.BlockSpec((P, lanes), lambda i: (0, 0)),        # freq expansion matrix
            pl.BlockSpec((1, lanes), lambda i: (0, 0)),        # phase row
            pl.BlockSpec((lanes, lanes), lambda i: (0, 0)),    # block-diag W[:d]
            pl.BlockSpec((lanes, lanes), lambda i: (0, 0)),    # block-diag W[d:]
            pl.BlockSpec((1, lanes), lambda i: (0, 0)),        # bias (tiled)
        ],
        out_specs=pl.BlockSpec((rb, lanes), lambda i: (i, 0)),
        compiler_params=pltpu.CompilerParams(
            dimension_semantics=("parallel",),
        ),
    )(x_p, sd_p, F, PH, Wx, Wp, Bt)

    out = out_p.reshape(n_al, d_model)                         # free view back
    # TODO(synk): training-mode dropout (p>0) not implemented; inference identity.
    return out if n == n_al else out[:n]


# ----------------------------------------------------------------------------
# Parameter init (PyTorch nn.Linear default init, weight stored transposed)
# ----------------------------------------------------------------------------
def init_pe_params(key, d_model):
    kw, kb = jax.random.split(key)
    fan_in = 2 * d_model
    bound = 1.0 / math.sqrt(fan_in)
    w = jax.random.uniform(kw, (fan_in, d_model), jnp.float32, -bound, bound)
    b = jax.random.uniform(kb, (1, d_model), jnp.float32, -bound, bound)
    return {"w": w, "b": b}


# ----------------------------------------------------------------------------
# Pure-JAX reference mirroring the PyTorch math
# ----------------------------------------------------------------------------
def _reference(params, x, sensor_dist):
    d_model = params["w"].shape[1]
    x2 = x.reshape(-1, d_model)
    sd = sensor_dist.reshape(-1)
    div_term = jnp.exp(
        jnp.arange(0.0, d_model, 2.0, dtype=jnp.float32)
        * jnp.float32(-(math.log(10000.0) / d_model))
    )
    ang = sd[:, None] * div_term[None, :]
    pe = jnp.zeros((x2.shape[0], d_model), jnp.float32)
    pe = pe.at[:, 0::2].set(jnp.sin(ang))
    pe = pe.at[:, 1::2].set(jnp.cos(ang))
    cat = jnp.concatenate([x2, pe], axis=-1)
    return cat @ params["w"] + params["b"]


# ----------------------------------------------------------------------------
if __name__ == "__main__":
    d_model = 32
    B, L = 2, 8

    root = jax.random.PRNGKey(0)
    kp, kx, ks, kx2, ks2 = jax.random.split(root, 5)

    params = init_pe_params(kp, d_model)
    x = jax.random.normal(kx, (B, L, d_model), jnp.float32)
    sensor_dist = jax.random.uniform(ks, (B, L), jnp.float32) * 50.0

    out = jax.block_until_ready(positional_encoding_sensor_dist(params, x, sensor_dist))
    ref = _reference(params, x, sensor_dist)
    np.testing.assert_allclose(np.asarray(out), np.asarray(ref), rtol=1e-5, atol=1e-5)

    # Also exercise a row count that is not a multiple of the packing alignment.
    x_b = jax.random.normal(kx2, (3, 5, d_model), jnp.float32)
    sd_b = jax.random.uniform(ks2, (3, 5), jnp.float32) * 50.0
    out_b = jax.block_until_ready(positional_encoding_sensor_dist(params, x_b, sd_b))
    ref_b = _reference(params, x_b, sd_b)
    np.testing.assert_allclose(np.asarray(out_b), np.asarray(ref_b), rtol=1e-5, atol=1e-5)

    print("KERNEL_OK")
</pallas_src>

<mosaic_0001>
module attributes {stable_mosaic.version = 11 : i64} {
  func.func @_pe_linear_kernel(%arg0: i32, %arg1: memref<8x128xf32, #tpu.memory_space<vmem>>, %arg2: memref<8x4xf32, #tpu.memory_space<vmem>>, %arg3: memref<4x128xf32, #tpu.memory_space<vmem>>, %arg4: memref<1x128xf32, #tpu.memory_space<vmem>>, %arg5: memref<128x128xf32, #tpu.memory_space<vmem>>, %arg6: memref<128x128xf32, #tpu.memory_space<vmem>>, %arg7: memref<1x128xf32, #tpu.memory_space<vmem>>, %arg8: memref<8x128xf32, #tpu.memory_space<vmem>>) attributes {dimension_semantics = [#tpu.dimension_semantics<parallel>], iteration_bounds = array<i64: 1>, scalar_prefetch = 0 : i64, scratch_operands = 0 : i64, tpu.core_type = #tpu.core_type<tc>, window_params = [{transform_indices = @transform_0, window_bounds = array<i64: 8, 128>}, {transform_indices = @transform_1, window_bounds = array<i64: 8, 4>}, {pipeline_mode = #tpu.pipeline_mode<synchronous>, transform_indices = @transform_2, window_bounds = array<i64: 4, 128>}, {pipeline_mode = #tpu.pipeline_mode<synchronous>, transform_indices = @transform_3, window_bounds = array<i64: 1, 128>}, {pipeline_mode = #tpu.pipeline_mode<synchronous>, transform_indices = @transform_4, window_bounds = array<i64: 128, 128>}, {pipeline_mode = #tpu.pipeline_mode<synchronous>, transform_indices = @transform_5, window_bounds = array<i64: 128, 128>}, {pipeline_mode = #tpu.pipeline_mode<synchronous>, transform_indices = @transform_6, window_bounds = array<i64: 1, 128>}, {transform_indices = @transform_7, window_bounds = array<i64: 8, 128>}]} {
    %c0 = arith.constant 0 : index
    %c0_0 = arith.constant 0 : index
    %0 = vector.load %arg1[%c0, %c0_0] : memref<8x128xf32, #tpu.memory_space<vmem>>, vector<8x128xf32>
    %c0_1 = arith.constant 0 : index
    %c0_2 = arith.constant 0 : index
    %1 = vector.load %arg2[%c0_1, %c0_2] : memref<8x4xf32, #tpu.memory_space<vmem>>, vector<8x4xf32>
    %c0_3 = arith.constant 0 : index
    %c0_4 = arith.constant 0 : index
    %2 = vector.load %arg3[%c0_3, %c0_4] : memref<4x128xf32, #tpu.memory_space<vmem>>, vector<4x128xf32>
    %cst = arith.constant dense<0.000000e+00> : vector<8x128xf32>
    %3 = tpu.matmul %1, %2, %cst {dimension_numbers = #tpu.dot_dimension_numbers<[1], [0], [0], [1], [0, 0, 1, 1], [], []>} : vector<8x4xf32>, vector<4x128xf32>, vector<8x128xf32> -> vector<8x128xf32>
    %c0_5 = arith.constant 0 : index
    %c0_6 = arith.constant 0 : index
    %4 = vector.load %arg4[%c0_5, %c0_6] : memref<1x128xf32, #tpu.memory_space<vmem>>, vector<1x128xf32>
    %5 = vector.broadcast %4 : vector<1x128xf32> to vector<8x128xf32>
    %6 = arith.addf %3, %5 : vector<8x128xf32>
    %7 = math.sin %6 : vector<8x128xf32>
    %c0_7 = arith.constant 0 : index
    %c0_8 = arith.constant 0 : index
    %8 = vector.load %arg5[%c0_7, %c0_8] : memref<128x128xf32, #tpu.memory_space<vmem>>, vector<128x128xf32>
    %cst_9 = arith.constant dense<0.000000e+00> : vector<8x128xf32>
    %9 = tpu.matmul %0, %8, %cst_9 {dimension_numbers = #tpu.dot_dimension_numbers<[1], [0], [0], [1], [0, 0, 1, 1], [], []>} : vector<8x128xf32>, vector<128x128xf32>, vector<8x128xf32> -> vector<8x128xf32>
    %c0_10 = arith.constant 0 : index
    %c0_11 = arith.constant 0 : index
    %10 = vector.load %arg6[%c0_10, %c0_11] : memref<128x128xf32, #tpu.memory_space<vmem>>, vector<128x128xf32>
    %cst_12 = arith.constant dense<0.000000e+00> : vector<8x128xf32>
    %11 = tpu.matmul %7, %10, %cst_12 {dimension_numbers = #tpu.dot_dimension_numbers<[1], [0], [0], [1], [0, 0, 1, 1], [], []>} : vector<8x128xf32>, vector<128x128xf32>, vector<8x128xf32> -> vector<8x128xf32>
    %12 = arith.addf %9, %11 : vector<8x128xf32>
    %c0_13 = arith.constant 0 : index
    %c0_14 = arith.constant 0 : index
    %13 = vector.load %arg7[%c0_13, %c0_14] : memref<1x128xf32, #tpu.memory_space<vmem>>, vector<1x128xf32>
    %14 = vector.broadcast %13 : vector<1x128xf32> to vector<8x128xf32>
    %15 = arith.addf %12, %14 : vector<8x128xf32>
    %c0_15 = arith.constant 0 : index
    %c0_16 = arith.constant 0 : index
    %16 = vector.load %arg8[%c0_15, %c0_16] : memref<8x128xf32, #tpu.memory_space<vmem>>, vector<8x128xf32>
    tpu.vector_store %arg8[%c0_15, %c0_16], %15 {strides = array<i32>} : memref<8x128xf32, #tpu.memory_space<vmem>>, vector<8x128xf32>,
    return
  }
  func.func @transform_0(%arg0: i32) -> (i32, i32) {
    %c0_i32 = arith.constant 0 : i32
    %c0_i32_0 = arith.constant 0 : i32
    return %arg0, %c0_i32 : i32, i32
  }
  func.func @transform_1(%arg0: i32) -> (i32, i32) {
    %c0_i32 = arith.constant 0 : i32
    %c0_i32_0 = arith.constant 0 : i32
    return %arg0, %c0_i32 : i32, i32
  }
  func.func @transform_2(%arg0: i32) -> (i32, i32) {
    %c0_i32 = arith.constant 0 : i32
    %c0_i32_0 = arith.constant 0 : i32
    %c0_i32_1 = arith.constant 0 : i32
    return %c0_i32, %c0_i32_0 : i32, i32
  }
  func.func @transform_3(%arg0: i32) -> (i32, i32) {
    %c0_i32 = arith.constant 0 : i32
    %c0_i32_0 = arith.constant 0 : i32
    %c0_i32_1 = arith.constant 0 : i32
    return %c0_i32, %c0_i32_0 : i32, i32
  }
  func.func @transform_4(%arg0: i32) -> (i32, i32) {
    %c0_i32 = arith.constant 0 : i32
    %c0_i32_0 = arith.constant 0 : i32
    %c0_i32_1 = arith.constant 0 : i32
    return %c0_i32, %c0_i32_0 : i32, i32
  }
  func.func @transform_5(%arg0: i32) -> (i32, i32) {
    %c0_i32 = arith.constant 0 : i32
    %c0_i32_0 = arith.constant 0 : i32
    %c0_i32_1 = arith.constant 0 : i32
    return %c0_i32, %c0_i32_0 : i32, i32
  }
  func.func @transform_6(%arg0: i32) -> (i32, i32) {
    %c0_i32 = arith.constant 0 : i32
    %c0_i32_0 = arith.constant 0 : i32
    %c0_i32_1 = arith.constant 0 : i32
    return %c0_i32, %c0_i32_0 : i32, i32
  }
  func.func @transform_7(%arg0: i32) -> (i32, i32) {
    %c0_i32 = arith.constant 0 : i32
    %c0_i32_0 = arith.constant 0 : i32
    return %arg0, %c0_i32 : i32, i32
  }
}

</mosaic_0001>

<llo_original>
// kernel: tpu_custom_call.1
$region0: #{tpu_custom_call.1}
  #allocation0 [shape = 'u32[]', space=smem, size = 0x4, offset = 0x4, fixed_abs, tag = 'smem constant byte address 0x4 - core index']
  #allocation1 [shape = 'u32[72,128]{1,0:T(1,128)}', space=vmem, size = 0x9000, scoped, tag = 'internal scratch']
  %s0 = inlined_call_operand.vmem [shape: f32[8,128], index: 0, kind: input, shape index: {}]
  %s1 = inlined_call_operand.vmem [shape: f32[8,4], index: 1, kind: input, shape index: {}]
  %s2 = inlined_call_operand.vmem [shape: f32[4,128], index: 2, kind: input, shape index: {}]
  %s3 = inlined_call_operand.vmem [shape: f32[1,128], index: 3, kind: input, shape index: {}]
  %s4 = inlined_call_operand.hbm [shape: f32[128,128], index: 4, kind: input, shape index: {}]
  %s5 = inlined_call_operand.hbm [shape: f32[128,128], index: 5, kind: input, shape index: {}]
  %s6 = inlined_call_operand.vmem [shape: f32[1,128], index: 6, kind: input, shape index: {}]
  %s7 = inlined_call_operand.hbm [shape: f32[8,128], index: 7, kind: output, shape index: {}]
  %s8 = sld [smem:[#allocation0]]
  $region46: #{tpu_custom_call.1} parent=0
    _
  %s10 = ssub.s32 1, %s8
  %s11 = scalar_select 0, %s10, %s8
  $region1: #{tpu_custom_call.1} parent=0
    #allocation2 [shape = 'u8[65536]{0}', space=vmem, size = 0x10000, scoped, tag = 'input window, operand 4, single buffered']
    #allocation3 [shape = 's32[1]{0}', space=sflag, size = 0x4, scoped, tag = 'scoped memory for tpu_custom_call.1']
    #allocation4 [shape = 's32[1]{0}', space=sflag, size = 0x4, scoped, tag = 'scoped memory for tpu_custom_call.1']
    #allocation5 [shape = 'u8[65536]{0}', space=vmem, size = 0x10000, scoped, tag = 'input window, operand 5, single buffered']
    #allocation6 [shape = 's32[1]{0}', space=sflag, size = 0x4, scoped, tag = 'scoped memory for tpu_custom_call.1']
    #allocation7 [shape = 'u8[4096]{0}', space=vmem, size = 0x1000, scoped, tag = 'output window, operand 0, single buffered']
    %12 = vsyncpa [#allocation3], 0
    %13 = vsyncpa [#allocation6], 0
    %14 = vsyncpa [#allocation4], 0
    // Predicated region
    $region2: #{tpu_custom_call.1} parent=1 // pred_check
      _
    $region3: #{tpu_custom_call.1} parent=1 // pred_check_branch
      %16 = sbr.rel (0) target = $region5
    $region4: #{tpu_custom_call.1} parent=1 // pred_region
      _
    $region5: #{tpu_custom_call.1} parent=1 // pred_fallthru
      _
    // Predicated region
    $region6: #{tpu_custom_call.1} parent=1 // pred_check
      _
    $region7: #{tpu_custom_call.1} parent=1 // pred_check_branch
      %18 = sbr.rel (0) target = $region9
    $region8: #{tpu_custom_call.1} parent=1 // pred_region
      _
    $region9: #{tpu_custom_call.1} parent=1 // pred_fallthru
      _
    // Predicated region
    $region10: #{tpu_custom_call.1} parent=1 // pred_check
      _
    $region11: #{tpu_custom_call.1} parent=1 // pred_check_branch
      %20 = sbr.rel (0) target = $region13
    $region12: #{tpu_custom_call.1} parent=1 // pred_region
      _
    $region13: #{tpu_custom_call.1} parent=1 // pred_fallthru
      _
    // Predicated region
    $region14: #{tpu_custom_call.1} parent=1 // pred_check
      _
    $region15: #{tpu_custom_call.1} parent=1 // pred_check_branch
      %22 = sbr.rel (0) target = $region17
    $region16: #{tpu_custom_call.1} parent=1 // pred_region
      _
    $region17: #{tpu_custom_call.1} parent=1 // pred_fallthru
      _
    // Predicated region
    $region18: #{tpu_custom_call.1} parent=1 // pred_check
      _
    $region19: #{tpu_custom_call.1} parent=1 // pred_check_branch
      %24 = sbr.rel (0) target = $region21
    $region20: #{tpu_custom_call.1} parent=1 // pred_region
      %26 = vsyncadd [#allocation3], 0
      %s27 = sshll.u32 %s4, 4
      %s28 = int_to_ptr.hbm [resolvable:$true] %s27
      %s29 = sshll.u32 [#allocation2], 4
      %s30 = int_to_ptr.vmem [resolvable:$true] %s29
      %35 = dma.hbm_to_vmem [thread:$0]  %s28, 2048, %s30, [#allocation3], 128, 128, 8
    $region21: #{tpu_custom_call.1} parent=1 // pred_fallthru
      _
    // Predicated region
    $region22: #{tpu_custom_call.1} parent=1 // pred_check
      _
    $region23: #{tpu_custom_call.1} parent=1 // pred_check_branch
      %37 = sbr.rel (0) target = $region25
    $region24: #{tpu_custom_call.1} parent=1 // pred_region
      %39 = vsyncadd [#allocation6], 0
      %s40 = sshll.u32 %s5, 4
      %s41 = int_to_ptr.hbm [resolvable:$true] %s40
      %s42 = sshll.u32 [#allocation5], 4
      %s43 = int_to_ptr.vmem [resolvable:$true] %s42
      %48 = dma.hbm_to_vmem [thread:$0]  %s41, 2048, %s43, [#allocation6], 128, 128, 8
    $region25: #{tpu_custom_call.1} parent=1 // pred_fallthru
      _
    // Predicated region
    $region26: #{tpu_custom_call.1} parent=1 // pred_check
      _
    $region27: #{tpu_custom_call.1} parent=1 // pred_check_branch
      %50 = sbr.rel (0) target = $region29
    $region28: #{tpu_custom_call.1} parent=1 // pred_region
      _
    $region29: #{tpu_custom_call.1} parent=1 // pred_fallthru
      _
    // Predicated region
    $region30: #{tpu_custom_call.1} parent=1 // pred_check
      _
    $region31: #{tpu_custom_call.1} parent=1 // pred_check_branch
      %52 = sbr.rel (0) target = $region33
    $region32: #{tpu_custom_call.1} parent=1 // pred_region
      %54 = dma.done [#allocation3], 2048
    $region33: #{tpu_custom_call.1} parent=1 // pred_fallthru
      _
    // Predicated region
    $region34: #{tpu_custom_call.1} parent=1 // pred_check
      _
    $region35: #{tpu_custom_call.1} parent=1 // pred_check_branch
      %56 = sbr.rel (0) target = $region37
    $region36: #{tpu_custom_call.1} parent=1 // pred_region
      %58 = dma.done [#allocation6], 2048
    $region37: #{tpu_custom_call.1} parent=1 // pred_fallthru
      _
    %v59 = vld [vmem:[%s0] sm:$0xff]
    %v60 = vld [vmem:[%s1] sm:$0xff]
    %v61 = vld [vmem:[%s2] sm:$0xf]
    %v62 = vld [vmem:[%s3] sm:$0x1]
    %v64 = vperm.slane %v62, 0
    %vm66 = vcmask 31744
    %v68 = vsel %vm66, %v60, 0
    %vm70 = vcmask 1043456
    %v72 = vsel %vm70, %v61, 0
    %74 = vmatpush.msra.mxu0 0.0
    %75 = vmatpush.msra.mxu0 0.0
    %76 = vmatpush.msra.mxu0 0.0
    %77 = vmatpush.msra.mxu0 0.0
    %78 = vmatpush.msra.mxu0 0.0
    %79 = vmatpush.msra.mxu0 0.0
    %80 = vmatpush.msra.mxu0 0.0
    %81 = vmatpush.msra.mxu0 0.0
    %82 = vmatpush.msra.mxu0 0.0
    %83 = vmatpush.msra.mxu0 0.0
    %84 = vmatpush.msra.mxu0 0.0
    %85 = vmatpush.msra.mxu0 0.0
    %86 = vmatpush.msra.mxu0 0.0
    %87 = vmatpush.msra.mxu0 0.0
    %88 = vmatpush.msra.mxu0 0.0
    %89 = vmatpush.msra.mxu0 %v72
    %90 = vmatmul.f32.gmra.mxu0 %v68
    %v91 = vpop.f32.mrf.mxu0
    %v92 = vadd.f32 %v64, %v91
    %93 = vdwg.mxu0
    %v94 = vand.u32 2147483647, %v92
    %vm95 = vcmp.le.f32.partialorder %v94, 0.7853982
    %vm96 = vcmp.lt.s32.totalorder %v92, 0
    %v97 = vand.u32 %v92, 2139095040
    %v98 = vshrl.u32 %v97, 23
    %v99 = vsub.s32 %v98, 127
    %v100 = vand.u32 2147483647, %v92
    %v101 = vand.u32 %v100, 8388607
    %v102 = vor.u32 %v101, 8388608
    %v103 = vsub.s32 0, %v102
    %v104 = vadd.s32 %v99, 1
    %vm105 = vcmp.gt.s32.totalorder %v104, 0
    %v106 = vsel %vm105, %v104, 0
    %v107 = vshrl.u32 %v106, 5
    %v108 = vand.u32 %v106, 31
    %v109 = vsub.s32 32, %v108
    %v110 = vshrl.u32 683565275, %v109
    %v111 = vshll.u32 683565275, %v108
    %v112 = vshrl.u32 2475754826, %v109
    %v113 = vor.u32 %v111, %v112
    %v114 = vshll.u32 2475754826, %v108
    %v115 = vshrl.u32 2131351028, %v109
    %v116 = vor.u32 %v114, %v115
    %v117 = vshll.u32 2131351028, %v108
    %v118 = vshrl.u32 2102212464, %v109
    %v119 = vor.u32 %v117, %v118
    %v120 = vshll.u32 2102212464, %v108
    %v121 = vshrl.u32 920167782, %v109
    %v122 = vor.u32 %v120, %v121
    %v123 = vshll.u32 920167782, %v108
    %v124 = vshrl.u32 1326507024, %v109
    %v125 = vor.u32 %v123, %v124
    %vm126 = vcmp.lt.s32.totalorder %v107, 1
    %vm127 = vcmp.lt.s32.totalorder %v107, 2
    %vm128 = vcmp.lt.s32.totalorder %v107, 3
    %vm129 = vcmp.lt.s32.totalorder %v107, 4
    %v130 = vsel %vm126, %v110, %v113
    %v131 = vsel %vm129, %v119, 2102212464
    %v132 = vsel %vm128, %v116, %v131
    %v133 = vsel %vm127, %v130, %v132
    %v134 = vsel %vm126, %v113, %v116
    %v135 = vsel %vm129, %v122, 920167782
    %v136 = vsel %vm128, %v119, %v135
    %v137 = vsel %vm127, %v134, %v136
    %v138 = vsel %vm126, %v116, %v119
    %v139 = vsel %vm129, %v125, 1326507024
    %v140 = vsel %vm128, %v122, %v139
    %v141 = vsel %vm127, %v138, %v140
    %v142 = vshll.u32 %v102, 8
    %v143 = vand.u32 %v142, 65535
    %v144 = vshrl.u32 %v142, 16
    %v145 = vand.u32 %v141, 65535
    %v146 = vshrl.u32 %v141, 16
    %v147 = vmul.u32 %v143, %v145
    %v148 = vmul.u32 %v143, %v146
    %v149 = vmul.u32 %v144, %v145
    %v150 = vmul.u32 %v144, %v146
    %v151 = vshll.u32 %v148, 16
    %v152 = vshrl.u32 %v148, 16
    %v153 = vshll.u32 %v149, 16
    %v154 = vshrl.u32 %v149, 16
    %vm155 = vc.u32 %v147, %v151
    %v156 = vsel %vm155, 1, 0
    %v157 = vadd.s32 %v147, %v151
    %v158 = vadd.s32 %v150, %v156
    %vm159 = vc.u32 %v157, %v153
    %v160 = vsel %vm159, 1, 0
    %v161 = vadd.s32 %v157, %v153
    %v162 = vadd.s32 %v158, %v160
    %v163 = vadd.s32 %v162, %v152
    %v164 = vadd.s32 %v163, %v154
    %v165 = vand.u32 %v142, 65535
    %v166 = vshrl.u32 %v142, 16
    %v167 = vand.u32 %v137, 65535
    %v168 = vshrl.u32 %v137, 16
    %v169 = vmul.u32 %v165, %v167
    %v170 = vmul.u32 %v165, %v168
    %v171 = vmul.u32 %v166, %v167
    %v172 = vmul.u32 %v166, %v168
    %v173 = vshll.u32 %v170, 16
    %v174 = vshrl.u32 %v170, 16
    %v175 = vshll.u32 %v171, 16
    %v176 = vshrl.u32 %v171, 16
    %vm177 = vc.u32 %v169, %v173
    %v178 = vsel %vm177, 1, 0
    %v179 = vadd.s32 %v169, %v173
    %v180 = vadd.s32 %v172, %v178
    %vm181 = vc.u32 %v179, %v175
    %v182 = vsel %vm181, 1, 0
    %v183 = vadd.s32 %v179, %v175
    %v184 = vadd.s32 %v180, %v182
    %v185 = vadd.s32 %v184, %v174
    %v186 = vadd.s32 %v185, %v176
    %v187 = vmul.u32 %v142, %v133
    %v188 = vadd.s32 %v164, %v183
    %vm189 = vc.u32 %v164, %v183
    %v190 = vadd.s32 %v186, 1
    %v191 = vsel %vm189, %v190, %v186
    %v192 = vadd.s32 %v187, %v191
    %v193 = vadd.s32 %v192, 536870912
    %v194 = vshrl.u32 %v193, 30
    %v195 = vshll.u32 %v194, 30
    %v196 = vsub.s32 %v192, %v195
    %vm197 = vcmp.lt.s32.totalorder %v196, 0
    %v198 = vsub.s32 0, %v196
    %v199 = vsel %vm197, %v198, %v196
    %v200 = vclz %v199
    %v201 = vsub.s32 %v200, 2
    %vm202 = vcmp.gt.s32.totalorder 0, %v201
    %v203 = vsel %vm202, 0, %v201
    %v204 = vsub.s32 32, %v203
    %v205 = vshll.u32 %v196, %v203
    %v206 = vshrl.u32 %v188, %v204
    %v207 = vor.u32 %v205, %v206
    %v208 = vsub.s32 4294967266, %v203
    %v209 = vadd.s32 %v208, 127
    %v210 = vshll.u32 %v209, 23
    %v211 = vor.u32 4788187, %v210
    %v212 = vand.u32 2147483647, %v211
    %v214 = vcvt.s32.f32 %v207
    %v215 = vmul.f32 %v214, %v212
    %v216 = vxor.u32 %v215, 2147483648
    %v217 = vsel %vm96, %v216, %v215
    %v218 = vsub.s32 4, %v194
    %v219 = vsel %vm96, %v218, %v194
    %v220 = vsel %vm95, %v92, %v217
    %v221 = vsel %vm95, 0, %v219
    %v222 = vmul.f32 %v220, %v220
    %v223 = vmul.f32 %v222, -0.001358992
    %v224 = vadd.f32 %v223, 0.041655596
    %v225 = vmul.f32 %v222, %v224
    %v226 = vadd.f32 %v225, -0.4999988
    %v227 = vmul.f32 %v222, %v226
    %v228 = vadd.f32 1.0, %v227
    %v229 = vmul.f32 %v220, %v220
    %v230 = vmul.f32 %v229, -0.00019511016
    %v231 = vadd.f32 %v230, 0.008332121
    %v232 = vmul.f32 %v229, %v231
    %v233 = vadd.f32 %v232, -0.16666654
    %v234 = vmul.f32 %v229, %v233
    %v235 = vadd.f32 %v234, 1.0
    %v236 = vmul.f32 %v235, %v220
    %vm237 = vweird.f32 %v92
    %v238 = vadd.s32 %v221, 3
    %v239 = vand.u32 %v238, 3
    %vm240 = vcmp.lt.s32.totalorder %v239, 2
    %vm241 = vcmp.eq.s32.totalorder %v239, 0
    %v242 = vxor.u32 %v236, 2147483648
    %v243 = vsel %vm241, %v228, %v242
    %vm244 = vcmp.eq.s32.totalorder %v239, 2
    %v245 = vxor.u32 %v228, 2147483648
    %v246 = vsel %vm244, %v245, %v236
    %v247 = vsel %vm240, %v243, %v246
    %v248 = vsel %vm237, nan, %v247
    %v249 = vld [vmem:[#allocation2] sm:$0xff]
    %v250 = vld [vmem:[#allocation2 + $0x8] sm:$0xff]
    %v251 = vld [vmem:[#allocation2 + $0x10] sm:$0xff]
    %v252 = vld [vmem:[#allocation2 + $0x18] sm:$0xff]
    %v253 = vld [vmem:[#allocation2 + $0x20] sm:$0xff]
    %v254 = vld [vmem:[#allocation2 + $0x28] sm:$0xff]
    %v255 = vld [vmem:[#allocation2 + $0x30] sm:$0xff]
    %v256 = vld [vmem:[#allocation2 + $0x38] sm:$0xff]
    %v257 = vld [vmem:[#allocation2 + $0x40] sm:$0xff]
    %v258 = vld [vmem:[#allocation2 + $0x48] sm:$0xff]
    %v259 = vld [vmem:[#allocation2 + $0x50] sm:$0xff]
    %v260 = vld [vmem:[#allocation2 + $0x58] sm:$0xff]
    %v261 = vld [vmem:[#allocation2 + $0x60] sm:$0xff]
    %v262 = vld [vmem:[#allocation2 + $0x68] sm:$0xff]
    %v263 = vld [vmem:[#allocation2 + $0x70] sm:$0xff]
    %v264 = vld [vmem:[#allocation2 + $0x78] sm:$0xff]
    %v265 = vld [vmem:[#allocation5] sm:$0xff]
    %v266 = vld [vmem:[#allocation5 + $0x8] sm:$0xff]
    %v267 = vld [vmem:[#allocation5 + $0x10] sm:$0xff]
    %v268 = vld [vmem:[#allocation5 + $0x18] sm:$0xff]
    %v269 = vld [vmem:[#allocation5 + $0x20] sm:$0xff]
    %v270 = vld [vmem:[#allocation5 + $0x28] sm:$0xff]
    %v271 = vld [vmem:[#allocation5 + $0x30] sm:$0xff]
    %v272 = vld [vmem:[#allocation5 + $0x38] sm:$0xff]
    %v273 = vld [vmem:[#allocation5 + $0x40] sm:$0xff]
    %v274 = vld [vmem:[#allocation5 + $0x48] sm:$0xff]
    %v275 = vld [vmem:[#allocation5 + $0x50] sm:$0xff]
    %v276 = vld [vmem:[#allocation5 + $0x58] sm:$0xff]
    %v277 = vld [vmem:[#allocation5 + $0x60] sm:$0xff]
    %v278 = vld [vmem:[#allocation5 + $0x68] sm:$0xff]
    %v279 = vld [vmem:[#allocation5 + $0x70] sm:$0xff]
    %v280 = vld [vmem:[#allocation5 + $0x78] sm:$0xff]
    %281 = vmatpush.msra.mxu0 %v280
    %282 = vmatpush.msra.mxu0 %v279
    %283 = vmatpush.msra.mxu0 %v278
    %284 = vmatpush.msra.mxu0 %v277
    %285 = vmatpush.msra.mxu0 %v276
    %286 = vmatpush.msra.mxu0 %v275
    %287 = vmatpush.msra.mxu0 %v274
    %288 = vmatpush.msra.mxu0 %v273
    %289 = vmatpush.msra.mxu0 %v272
    %290 = vmatpush.msra.mxu0 %v271
    %291 = vmatpush.msra.mxu0 %v270
    %292 = vmatpush.msra.mxu0 %v269
    %293 = vmatpush.msra.mxu0 %v268
    %294 = vmatpush.msra.mxu0 %v267
    %295 = vmatpush.msra.mxu0 %v266
    %296 = vmatpush.msra.mxu0 %v265
    %297 = vmatmul.f32.gmra.mxu0 %v248
    %v298 = vpop.f32.mrf.mxu0
    %v299 = vadd.f32 0.0, %v298
    %300 = vdwg.mxu0
    %301 = vmatpush.msra.mxu0 %v264
    %302 = vmatpush.msra.mxu0 %v263
    %303 = vmatpush.msra.mxu0 %v262
    %304 = vmatpush.msra.mxu0 %v261
    %305 = vmatpush.msra.mxu0 %v260
    %306 = vmatpush.msra.mxu0 %v259
    %307 = vmatpush.msra.mxu0 %v258
    %308 = vmatpush.msra.mxu0 %v257
    %309 = vmatpush.msra.mxu0 %v256
    %310 = vmatpush.msra.mxu0 %v255
    %311 = vmatpush.msra.mxu0 %v254
    %312 = vmatpush.msra.mxu0 %v253
    %313 = vmatpush.msra.mxu0 %v252
    %314 = vmatpush.msra.mxu0 %v251
    %315 = vmatpush.msra.mxu0 %v250
    %316 = vmatpush.msra.mxu0 %v249
    %317 = vmatmul.f32.gmra.mxu0 %v59
    %v318 = vpop.f32.mrf.mxu0
    %v319 = vadd.f32 %v299, %v318
    %320 = vdwg.mxu0
    %v321 = vld [vmem:[%s6] sm:$0x1]
    %v323 = vperm.slane %v321, 0
    %v325 = vadd.f32 %v319, %v323
    %326 = vst [vmem:[#allocation7] sm:$0xff] %v325
    // Predicated region
    $region38: #{tpu_custom_call.1} parent=1 // pred_check
      _
    $region39: #{tpu_custom_call.1} parent=1 // pred_check_branch
      %328 = sbr.rel (0) target = $region41
    $region40: #{tpu_custom_call.1} parent=1 // pred_region
      %330 = vsyncadd [#allocation4], 0
      %s332 = sshll.u32 [#allocation7], 4
      %s333 = int_to_ptr.vmem [resolvable:$true] %s332
      %s334 = sshll.u32 %s7, 4
      %s335 = int_to_ptr.hbm [resolvable:$true] %s334
      %337 = dma.vmem_to_hbm [thread:$0]  %s333, 128, %s335, [#allocation4]
    $region41: #{tpu_custom_call.1} parent=1 // pred_fallthru
      _
    // Predicated region
    $region42: #{tpu_custom_call.1} parent=1 // pred_check
      _
    $region43: #{tpu_custom_call.1} parent=1 // pred_check_branch
      %339 = sbr.rel (0) target = $region45
    $region44: #{tpu_custom_call.1} parent=1 // pred_region
      %341 = dma.done [#allocation4], 128
    $region45: #{tpu_custom_call.1} parent=1 // pred_fallthru
      _
    %342 = vsyncpa [#allocation3], 1
    %343 = vsyncpa [#allocation6], 1
    %344 = vsyncpa [#allocation4], 1

</llo_original>
